<compile_context>
chip_gen: v5e
topology: v5e:2x2
jax: 0.10.0
libtpu: 0.0.40
codegen_flags: <defaults>
</compile_context>

<pallas_src>
import functools

import jax
import jax.numpy as jnp
from jax.experimental import pallas as pl
from jax.experimental.pallas import tpu as pltpu


def _layer_norm(y, gamma, beta, eps=1e-5):
    mu = jnp.mean(y, axis=-1, keepdims=True)
    var = jnp.mean((y - mu) ** 2, axis=-1, keepdims=True)
    return (y - mu) * jax.lax.rsqrt(var + eps) * gamma + beta


def _variance_predictor_kernel(kernel_size, seq_len,
                               x_ref, mask_ref,
                               w1_ref, b1_ref, g1_ref, be1_ref,
                               w2_ref, b2_ref, g2_ref, be2_ref,
                               wl_ref, bl_ref,
                               out_ref):
    k = kernel_size
    pad = (k - 1) // 2
    x = x_ref[...]                     # (MB, H) float32, MB = Bb * seq_len
    mb = x.shape[0]

    # Time position of each flattened row inside its own sequence.  Taps that
    # reach outside [0, seq_len) are the conv's zero padding; the same mask
    # also kills rows that wrapped across batch boundaries after the roll.
    tpos = jax.lax.broadcasted_iota(jnp.int32, (mb, 1), 0) % seq_len

    def conv1d(h, w_ref, b_ref):
        # K-tap "same" conv as K matmuls on row-rotated activations.
        # pltpu.roll -> XLU rotation (co-issues with the MXU pushes), no
        # materialized shifted copies or zero-padded concat buffer.
        cdt = w_ref.dtype              # f32 or bf16 (cast on host)
        acc = None
        for j in range(k):             # static, k is small
            d = j - pad                # tap offset along time
            tap = h if d == 0 else pltpu.roll(h, shift=(-d) % mb, axis=0)
            if d != 0:
                valid = jnp.logical_and(tpos + d >= 0, tpos + d < seq_len)
                tap = jnp.where(valid, tap, 0.0)
            y = jnp.dot(tap.astype(cdt), w_ref[j],
                        preferred_element_type=jnp.float32)
            acc = y if acc is None else acc + y
        return acc + b_ref[...]        # b_ref is (1, Cout), broadcasts

    # conv1d_1 -> relu_1 -> layer_norm_1 -> dropout_1 (identity at inference)
    h = conv1d(x, w1_ref, b1_ref)
    h = jnp.maximum(h, 0.0)
    h = _layer_norm(h, g1_ref[...], be1_ref[...])
    # TODO(synk): nn.Dropout omitted (identity in eval; training-mode RNG not modeled)

    # conv1d_2 -> relu_2 -> layer_norm_2 -> dropout_2 (identity)
    h = conv1d(h, w2_ref, b2_ref)
    h = jnp.maximum(h, 0.0)
    h = _layer_norm(h, g2_ref[...], be2_ref[...])

    # linear_layer (F -> 1): VPU multiply + lane reduction (no N=1 MXU pass),
    # bias from SMEM; then squeeze(-1) + masked_fill(mask, 0.0).
    o = jnp.sum(h * wl_ref[...], axis=-1) + bl_ref[0]      # (MB,)
    m = mask_ref[0, 0, :]                                   # (MB,) int32
    out_ref[0, 0, :] = jnp.where(m != 0, 0.0, o)


def _pick_batch_block(batch, seq_len, target_rows=512):
    """Largest divisor Bb of batch with Bb*seq_len <= ~target_rows."""
    best = 1
    for bb in range(1, batch + 1):
        if batch % bb == 0 and bb * seq_len <= max(target_rows, seq_len):
            best = bb
    return best


def variance_predictor(x, mask, params, kernel_size, *,
                       compute_dtype=jnp.float32, batch_block=None,
                       vmem_limit_bytes=None):
    """x: (B,T,H) f32, mask: (B,T) bool (True == padded) -> (B,T) f32."""
    B, T, H = x.shape
    K = kernel_size
    F = params["w1"].shape[2]

    if batch_block is None:
        batch_block = _pick_batch_block(B, T)
    assert B % batch_block == 0
    G = B // batch_block
    MB = batch_block * T
    # (8,128)-tiling: a partial row-block must be a multiple of 8 rows;
    # otherwise fall back to folding the whole batch (full dim is always legal).
    if G > 1 and MB % 8 != 0:
        batch_block, G, MB = B, 1, B * T
    # NOTE: for production T (e.g. T=8192, H=512 on v7x's 64 MiB VMEM) tile T
    # with a (k-1)-row halo and/or raise vmem_limit_bytes; not needed here.

    x_flat = x.reshape(B * T, H)                      # keep f32 (VPU/LN math)
    mask3 = mask.astype(jnp.int32).reshape(G, 1, MB)  # lane-dense mask slab

    w1 = params["w1"].astype(compute_dtype)           # (K, H, F) for the MXU
    w2 = params["w2"].astype(compute_dtype)           # (K, F, F)
    wl_row = params["wl"].reshape(1, F).astype(jnp.float32)
    bl = params["bl"].reshape(1).astype(jnp.float32)  # scalar -> SMEM

    def full_spec(a):
        shape = a.shape
        zeros = (0,) * len(shape)
        return pl.BlockSpec(shape, lambda i, _z=zeros: _z)

    kernel = functools.partial(_variance_predictor_kernel, K, T)

    out = pl.pallas_call(
        kernel,
        out_shape=jax.ShapeDtypeStruct((G, 1, MB), jnp.float32),
        grid=(G,),
        in_specs=[
            pl.BlockSpec((MB, H), lambda i: (i, 0)),        # flattened rows
            pl.BlockSpec((1, 1, MB), lambda i: (i, 0, 0)),  # mask slab
            full_spec(w1), full_spec(params["b1"]),
            full_spec(params["g1"]), full_spec(params["be1"]),
            full_spec(w2), full_spec(params["b2"]),
            full_spec(params["g2"]), full_spec(params["be2"]),
            full_spec(wl_row),
            pl.BlockSpec(memory_space=pltpu.MemorySpace.SMEM),  # bl scalar
        ],
        out_specs=pl.BlockSpec((1, 1, MB), lambda i: (i, 0, 0)),  # lane-dense
        compiler_params=pltpu.CompilerParams(
            dimension_semantics=("parallel",),
            vmem_limit_bytes=vmem_limit_bytes),
    )(x_flat, mask3,
      w1, params["b1"], params["g1"], params["be1"],
      w2, params["b2"], params["g2"], params["be2"],
      wl_row, bl)
    return out.reshape(B, T)


def ref_forward(x, mask, params, k):
    """Pure-JAX reference (independent conv path) for correctness check."""
    pad = (k - 1) // 2

    def conv(xin, w, b):
        y = jax.lax.conv_general_dilated(
            xin, w, window_strides=(1,), padding=[(pad, k - 1 - pad)],
            dimension_numbers=("NWC", "WIO", "NWC"))
        return y + b

    h = conv(x, params["w1"], params["b1"])
    h = jnp.maximum(h, 0.0)
    h = _layer_norm(h, params["g1"], params["be1"])
    h = conv(h, params["w2"], params["b2"])
    h = jnp.maximum(h, 0.0)
    h = _layer_norm(h, params["g2"], params["be2"])
    o = (h @ params["wl"] + params["bl"])[..., 0]
    return jnp.where(mask, 0.0, o)


if __name__ == "__main__":
    # Module hyperparameters (small, forward-consistent shapes)
    B, T = 2, 16
    H = 32          # encoder_hidden_dim
    F = 32          # variance_predictor_filter_size
    K = 3           # variance_predictor_kernel_size (odd -> 'same' padding)

    key = jax.random.PRNGKey(0)
    ks = jax.random.split(key, 8)
    scale = 0.1
    params = {
        "w1": scale * jax.random.normal(ks[0], (K, H, F), jnp.float32),
        "b1": scale * jax.random.normal(ks[1], (1, F), jnp.float32),
        "g1": jnp.ones((1, F), jnp.float32),
        "be1": jnp.zeros((1, F), jnp.float32),
        "w2": scale * jax.random.normal(ks[2], (K, F, F), jnp.float32),
        "b2": scale * jax.random.normal(ks[3], (1, F), jnp.float32),
        "g2": jnp.ones((1, F), jnp.float32),
        "be2": jnp.zeros((1, F), jnp.float32),
        "wl": scale * jax.random.normal(ks[4], (F, 1), jnp.float32),
        "bl": scale * jax.random.normal(ks[5], (1, 1), jnp.float32),
    }

    x = jax.random.normal(ks[6], (B, T, H), jnp.float32)
    lengths = jnp.array([T, 10], jnp.int32)
    mask = jnp.arange(T)[None, :] >= lengths[:, None]   # True == padded position

    ref = ref_forward(x, mask, params, K)

    # f32 path: whole batch folded into a single grid step.
    out = jax.block_until_ready(variance_predictor(x, mask, params, K))
    assert out.shape == (B, T)
    assert jnp.allclose(out, ref, rtol=1e-4, atol=1e-4), (
        f"f32 max abs err {jnp.max(jnp.abs(out - ref))}")

    # bf16-MXU path (v6e/v7x style), one sequence per parallel grid step.
    out_bf16 = jax.block_until_ready(
        variance_predictor(x, mask, params, K,
                           compute_dtype=jnp.bfloat16, batch_block=1))
    assert jnp.allclose(out_bf16, ref, rtol=8e-2, atol=8e-2), (
        f"bf16 max abs err {jnp.max(jnp.abs(out_bf16 - ref))}")

    print("KERNEL_OK")
</pallas_src>

<mosaic_0001>
module attributes {stable_mosaic.version = 11 : i64} {
  func.func @_variance_predictor_kernel(%arg0: i32, %arg1: memref<32x32xf32, #tpu.memory_space<vmem>>, %arg2: memref<1x1x32xi32, #tpu.memory_space<vmem>>, %arg3: memref<3x32x32xf32, #tpu.memory_space<vmem>>, %arg4: memref<1x32xf32, #tpu.memory_space<vmem>>, %arg5: memref<1x32xf32, #tpu.memory_space<vmem>>, %arg6: memref<1x32xf32, #tpu.memory_space<vmem>>, %arg7: memref<3x32x32xf32, #tpu.memory_space<vmem>>, %arg8: memref<1x32xf32, #tpu.memory_space<vmem>>, %arg9: memref<1x32xf32, #tpu.memory_space<vmem>>, %arg10: memref<1x32xf32, #tpu.memory_space<vmem>>, %arg11: memref<1x32xf32, #tpu.memory_space<vmem>>, %arg12: memref<1xf32, #tpu.memory_space<smem>>, %arg13: memref<1x1x32xf32, #tpu.memory_space<vmem>>) attributes {dimension_semantics = [#tpu.dimension_semantics<parallel>], iteration_bounds = array<i64: 1>, scalar_prefetch = 0 : i64, scratch_operands = 0 : i64, tpu.core_type = #tpu.core_type<tc>, window_params = [{transform_indices = @transform_0, window_bounds = array<i64: 32, 32>}, {transform_indices = @transform_1, window_bounds = array<i64: 1, 1, 32>}, {pipeline_mode = #tpu.pipeline_mode<synchronous>, transform_indices = @transform_2, window_bounds = array<i64: 3, 32, 32>}, {pipeline_mode = #tpu.pipeline_mode<synchronous>, transform_indices = @transform_3, window_bounds = array<i64: 1, 32>}, {pipeline_mode = #tpu.pipeline_mode<synchronous>, transform_indices = @transform_4, window_bounds = array<i64: 1, 32>}, {pipeline_mode = #tpu.pipeline_mode<synchronous>, transform_indices = @transform_5, window_bounds = array<i64: 1, 32>}, {pipeline_mode = #tpu.pipeline_mode<synchronous>, transform_indices = @transform_6, window_bounds = array<i64: 3, 32, 32>}, {pipeline_mode = #tpu.pipeline_mode<synchronous>, transform_indices = @transform_7, window_bounds = array<i64: 1, 32>}, {pipeline_mode = #tpu.pipeline_mode<synchronous>, transform_indices = @transform_8, window_bounds = array<i64: 1, 32>}, {pipeline_mode = #tpu.pipeline_mode<synchronous>, transform_indices = @transform_9, window_bounds = array<i64: 1, 32>}, {pipeline_mode = #tpu.pipeline_mode<synchronous>, transform_indices = @transform_10, window_bounds = array<i64: 1, 32>}, {transform_indices = @transform_11, window_bounds = array<i64: 1>}, {transform_indices = @transform_12, window_bounds = array<i64: 1, 1, 32>}]} {
    %c0 = arith.constant 0 : index
    %c0_0 = arith.constant 0 : index
    %0 = vector.load %arg1[%c0, %c0_0] : memref<32x32xf32, #tpu.memory_space<vmem>>, vector<32x32xf32>
    %1 = tpu.iota {dimensions = array<i32: 0>} : vector<32x1xi32>
    %c16_i32 = arith.constant 16 : i32
    %c0_i32 = arith.constant 0 : i32
    %2 = arith.cmpi eq, %c16_i32, %c0_i32 : i32
    %c1_i32 = arith.constant 1 : i32
    %3 = arith.select %2, %c1_i32, %c16_i32 : i32
    %4 = vector.broadcast %3 : i32 to vector<32x1xi32>
    %5 = arith.remsi %1, %4 : vector<32x1xi32>
    %c0_i32_1 = arith.constant 0 : i32
    %6 = vector.broadcast %c0_i32_1 : i32 to vector<32x1xi32>
    %7 = arith.cmpi ne, %5, %6 : vector<32x1xi32>
    %c0_i32_2 = arith.constant 0 : i32
    %8 = vector.broadcast %c0_i32_2 : i32 to vector<32x1xi32>
    %9 = arith.cmpi slt, %5, %8 : vector<32x1xi32>
    %c0_i32_3 = arith.constant 0 : i32
    %10 = arith.cmpi slt, %3, %c0_i32_3 : i32
    %11 = vector.broadcast %10 : i1 to vector<32x1xi1>
    %12 = vector.broadcast %11 : vector<32x1xi1> to vector<32x1xi1>
    %13 = arith.xori %9, %12 : vector<32x1xi1>
    %14 = arith.andi %13, %7 : vector<32x1xi1>
    %15 = vector.broadcast %3 : i32 to vector<32x1xi32>
    %16 = arith.addi %5, %15 : vector<32x1xi32>
    %17 = arith.select %14, %16, %5 : vector<32x1xi1>, vector<32x1xi32>
    %c1_i32_4 = arith.constant 1 : i32
    %18 = tpu.dynamic_rotate %0 by %c1_i32_4 dim 0 : vector<32x32xf32>, i32 -> vector<32x32xf32>
    %c-1_i32 = arith.constant -1 : i32
    %19 = vector.broadcast %c-1_i32 : i32 to vector<32x1xi32>
    %20 = arith.addi %17, %19 : vector<32x1xi32>
    %c0_i32_5 = arith.constant 0 : i32
    %21 = vector.broadcast %c0_i32_5 : i32 to vector<32x1xi32>
    %22 = arith.cmpi sge, %20, %21 : vector<32x1xi32>
    %c-1_i32_6 = arith.constant -1 : i32
    %23 = vector.broadcast %c-1_i32_6 : i32 to vector<32x1xi32>
    %24 = arith.addi %17, %23 : vector<32x1xi32>
    %c16_i32_7 = arith.constant 16 : i32
    %25 = vector.broadcast %c16_i32_7 : i32 to vector<32x1xi32>
    %26 = arith.cmpi slt, %24, %25 : vector<32x1xi32>
    %27 = arith.andi %22, %26 : vector<32x1xi1>
    %cst = arith.constant 0.000000e+00 : f32
    %28 = vector.shape_cast %27 : vector<32x1xi1> to vector<32x1xi1>
    %29 = vector.broadcast %28 : vector<32x1xi1> to vector<32x32xi1>
    %30 = vector.broadcast %cst : f32 to vector<32x32xf32>
    %31 = arith.select %29, %18, %30 : vector<32x32xi1>, vector<32x32xf32>
    %c0_8 = arith.constant 0 : index
    %c0_9 = arith.constant 0 : index
    %c0_10 = arith.constant 0 : index
    %32 = vector.load %arg3[%c0_8, %c0_9, %c0_10] : memref<3x32x32xf32, #tpu.memory_space<vmem>>, vector<1x32x32xf32>
    %33 = vector.shape_cast %32 : vector<1x32x32xf32> to vector<32x32xf32>
    %cst_11 = arith.constant dense<0.000000e+00> : vector<32x32xf32>
    %34 = tpu.matmul %31, %33, %cst_11 {dimension_numbers = #tpu.dot_dimension_numbers<[1], [0], [0], [1], [0, 0, 1, 1], [], []>} : vector<32x32xf32>, vector<32x32xf32>, vector<32x32xf32> -> vector<32x32xf32>
    %c1 = arith.constant 1 : index
    %c0_12 = arith.constant 0 : index
    %c0_13 = arith.constant 0 : index
    %35 = vector.load %arg3[%c1, %c0_12, %c0_13] : memref<3x32x32xf32, #tpu.memory_space<vmem>>, vector<1x32x32xf32>
    %36 = vector.shape_cast %35 : vector<1x32x32xf32> to vector<32x32xf32>
    %cst_14 = arith.constant dense<0.000000e+00> : vector<32x32xf32>
    %37 = tpu.matmul %0, %36, %cst_14 {dimension_numbers = #tpu.dot_dimension_numbers<[1], [0], [0], [1], [0, 0, 1, 1], [], []>} : vector<32x32xf32>, vector<32x32xf32>, vector<32x32xf32> -> vector<32x32xf32>
    %38 = arith.addf %34, %37 : vector<32x32xf32>
    %c31_i32 = arith.constant 31 : i32
    %39 = tpu.dynamic_rotate %0 by %c31_i32 dim 0 : vector<32x32xf32>, i32 -> vector<32x32xf32>
    %c1_i32_15 = arith.constant 1 : i32
    %40 = vector.broadcast %c1_i32_15 : i32 to vector<32x1xi32>
    %41 = arith.addi %17, %40 : vector<32x1xi32>
    %c0_i32_16 = arith.constant 0 : i32
    %42 = vector.broadcast %c0_i32_16 : i32 to vector<32x1xi32>
    %43 = arith.cmpi sge, %41, %42 : vector<32x1xi32>
    %c1_i32_17 = arith.constant 1 : i32
    %44 = vector.broadcast %c1_i32_17 : i32 to vector<32x1xi32>
    %45 = arith.addi %17, %44 : vector<32x1xi32>
    %c16_i32_18 = arith.constant 16 : i32
    %46 = vector.broadcast %c16_i32_18 : i32 to vector<32x1xi32>
    %47 = arith.cmpi slt, %45, %46 : vector<32x1xi32>
    %48 = arith.andi %43, %47 : vector<32x1xi1>
    %cst_19 = arith.constant 0.000000e+00 : f32
    %49 = vector.shape_cast %48 : vector<32x1xi1> to vector<32x1xi1>
    %50 = vector.broadcast %49 : vector<32x1xi1> to vector<32x32xi1>
    %51 = vector.broadcast %cst_19 : f32 to vector<32x32xf32>
    %52 = arith.select %50, %39, %51 : vector<32x32xi1>, vector<32x32xf32>
    %c2 = arith.constant 2 : index
    %c0_20 = arith.constant 0 : index
    %c0_21 = arith.constant 0 : index
    %53 = vector.load %arg3[%c2, %c0_20, %c0_21] : memref<3x32x32xf32, #tpu.memory_space<vmem>>, vector<1x32x32xf32>
    %54 = vector.shape_cast %53 : vector<1x32x32xf32> to vector<32x32xf32>
    %cst_22 = arith.constant dense<0.000000e+00> : vector<32x32xf32>
    %55 = tpu.matmul %52, %54, %cst_22 {dimension_numbers = #tpu.dot_dimension_numbers<[1], [0], [0], [1], [0, 0, 1, 1], [], []>} : vector<32x32xf32>, vector<32x32xf32>, vector<32x32xf32> -> vector<32x32xf32>
    %56 = arith.addf %38, %55 : vector<32x32xf32>
    %c0_23 = arith.constant 0 : index
    %c0_24 = arith.constant 0 : index
    %57 = vector.load %arg4[%c0_23, %c0_24] : memref<1x32xf32, #tpu.memory_space<vmem>>, vector<1x32xf32>
    %58 = vector.broadcast %57 : vector<1x32xf32> to vector<32x32xf32>
    %59 = arith.addf %56, %58 : vector<32x32xf32>
    %cst_25 = arith.constant 0.000000e+00 : f32
    %60 = vector.broadcast %cst_25 : f32 to vector<32x32xf32>
    %61 = arith.maximumf %59, %60 : vector<32x32xf32>
    %c0_26 = arith.constant 0 : index
    %c0_27 = arith.constant 0 : index
    %62 = vector.load %arg5[%c0_26, %c0_27] : memref<1x32xf32, #tpu.memory_space<vmem>>, vector<1x32xf32>
    %c0_28 = arith.constant 0 : index
    %c0_29 = arith.constant 0 : index
    %63 = vector.load %arg6[%c0_28, %c0_29] : memref<1x32xf32, #tpu.memory_space<vmem>>, vector<1x32xf32>
    %cst_30 = arith.constant dense<0.000000e+00> : vector<32xf32>
    %64 = vector.multi_reduction <add>, %61, %cst_30 [1] : vector<32x32xf32> to vector<32xf32>
    %65 = vector.shape_cast %64 : vector<32xf32> to vector<32x1xf32>
    %cst_31 = arith.constant 3.200000e+01 : f32
    %66 = vector.broadcast %cst_31 : f32 to vector<32x1xf32>
    %67 = arith.divf %65, %66 : vector<32x1xf32>
    %68 = vector.broadcast %67 : vector<32x1xf32> to vector<32x32xf32>
    %69 = arith.subf %61, %68 : vector<32x32xf32>
    %70 = arith.mulf %69, %69 : vector<32x32xf32>
    %cst_32 = arith.constant dense<0.000000e+00> : vector<32xf32>
    %71 = vector.multi_reduction <add>, %70, %cst_32 [1] : vector<32x32xf32> to vector<32xf32>
    %72 = vector.shape_cast %71 : vector<32xf32> to vector<32x1xf32>
    %cst_33 = arith.constant 3.200000e+01 : f32
    %73 = vector.broadcast %cst_33 : f32 to vector<32x1xf32>
    %74 = arith.divf %72, %73 : vector<32x1xf32>
    %75 = vector.broadcast %67 : vector<32x1xf32> to vector<32x32xf32>
    %76 = arith.subf %61, %75 : vector<32x32xf32>
    %cst_34 = arith.constant 9.99999974E-6 : f32
    %77 = vector.broadcast %cst_34 : f32 to vector<32x1xf32>
    %78 = arith.addf %74, %77 : vector<32x1xf32>
    %79 = math.rsqrt %78 : vector<32x1xf32>
    %80 = vector.broadcast %79 : vector<32x1xf32> to vector<32x32xf32>
    %81 = arith.mulf %76, %80 : vector<32x32xf32>
    %82 = vector.broadcast %62 : vector<1x32xf32> to vector<32x32xf32>
    %83 = arith.mulf %81, %82 : vector<32x32xf32>
    %84 = vector.broadcast %63 : vector<1x32xf32> to vector<32x32xf32>
    %85 = arith.addf %83, %84 : vector<32x32xf32>
    %c1_i32_35 = arith.constant 1 : i32
    %86 = tpu.dynamic_rotate %85 by %c1_i32_35 dim 0 : vector<32x32xf32>, i32 -> vector<32x32xf32>
    %c-1_i32_36 = arith.constant -1 : i32
    %87 = vector.broadcast %c-1_i32_36 : i32 to vector<32x1xi32>
    %88 = arith.addi %17, %87 : vector<32x1xi32>
    %c0_i32_37 = arith.constant 0 : i32
    %89 = vector.broadcast %c0_i32_37 : i32 to vector<32x1xi32>
    %90 = arith.cmpi sge, %88, %89 : vector<32x1xi32>
    %c-1_i32_38 = arith.constant -1 : i32
    %91 = vector.broadcast %c-1_i32_38 : i32 to vector<32x1xi32>
    %92 = arith.addi %17, %91 : vector<32x1xi32>
    %c16_i32_39 = arith.constant 16 : i32
    %93 = vector.broadcast %c16_i32_39 : i32 to vector<32x1xi32>
    %94 = arith.cmpi slt, %92, %93 : vector<32x1xi32>
    %95 = arith.andi %90, %94 : vector<32x1xi1>
    %cst_40 = arith.constant 0.000000e+00 : f32
    %96 = vector.shape_cast %95 : vector<32x1xi1> to vector<32x1xi1>
    %97 = vector.broadcast %96 : vector<32x1xi1> to vector<32x32xi1>
    %98 = vector.broadcast %cst_40 : f32 to vector<32x32xf32>
    %99 = arith.select %97, %86, %98 : vector<32x32xi1>, vector<32x32xf32>
    %c0_41 = arith.constant 0 : index
    %c0_42 = arith.constant 0 : index
    %c0_43 = arith.constant 0 : index
    %100 = vector.load %arg7[%c0_41, %c0_42, %c0_43] : memref<3x32x32xf32, #tpu.memory_space<vmem>>, vector<1x32x32xf32>
    %101 = vector.shape_cast %100 : vector<1x32x32xf32> to vector<32x32xf32>
    %cst_44 = arith.constant dense<0.000000e+00> : vector<32x32xf32>
    %102 = tpu.matmul %99, %101, %cst_44 {dimension_numbers = #tpu.dot_dimension_numbers<[1], [0], [0], [1], [0, 0, 1, 1], [], []>} : vector<32x32xf32>, vector<32x32xf32>, vector<32x32xf32> -> vector<32x32xf32>
    %c1_45 = arith.constant 1 : index
    %c0_46 = arith.constant 0 : index
    %c0_47 = arith.constant 0 : index
    %103 = vector.load %arg7[%c1_45, %c0_46, %c0_47] : memref<3x32x32xf32, #tpu.memory_space<vmem>>, vector<1x32x32xf32>
    %104 = vector.shape_cast %103 : vector<1x32x32xf32> to vector<32x32xf32>
    %cst_48 = arith.constant dense<0.000000e+00> : vector<32x32xf32>
    %105 = tpu.matmul %85, %104, %cst_48 {dimension_numbers = #tpu.dot_dimension_numbers<[1], [0], [0], [1], [0, 0, 1, 1], [], []>} : vector<32x32xf32>, vector<32x32xf32>, vector<32x32xf32> -> vector<32x32xf32>
    %106 = arith.addf %102, %105 : vector<32x32xf32>
    %c31_i32_49 = arith.constant 31 : i32
    %107 = tpu.dynamic_rotate %85 by %c31_i32_49 dim 0 : vector<32x32xf32>, i32 -> vector<32x32xf32>
    %c1_i32_50 = arith.constant 1 : i32
    %108 = vector.broadcast %c1_i32_50 : i32 to vector<32x1xi32>
    %109 = arith.addi %17, %108 : vector<32x1xi32>
    %c0_i32_51 = arith.constant 0 : i32
    %110 = vector.broadcast %c0_i32_51 : i32 to vector<32x1xi32>
    %111 = arith.cmpi sge, %109, %110 : vector<32x1xi32>
    %c1_i32_52 = arith.constant 1 : i32
    %112 = vector.broadcast %c1_i32_52 : i32 to vector<32x1xi32>
    %113 = arith.addi %17, %112 : vector<32x1xi32>
    %c16_i32_53 = arith.constant 16 : i32
    %114 = vector.broadcast %c16_i32_53 : i32 to vector<32x1xi32>
    %115 = arith.cmpi slt, %113, %114 : vector<32x1xi32>
    %116 = arith.andi %111, %115 : vector<32x1xi1>
    %cst_54 = arith.constant 0.000000e+00 : f32
    %117 = vector.shape_cast %116 : vector<32x1xi1> to vector<32x1xi1>
    %118 = vector.broadcast %117 : vector<32x1xi1> to vector<32x32xi1>
    %119 = vector.broadcast %cst_54 : f32 to vector<32x32xf32>
    %120 = arith.select %118, %107, %119 : vector<32x32xi1>, vector<32x32xf32>
    %c2_55 = arith.constant 2 : index
    %c0_56 = arith.constant 0 : index
    %c0_57 = arith.constant 0 : index
    %121 = vector.load %arg7[%c2_55, %c0_56, %c0_57] : memref<3x32x32xf32, #tpu.memory_space<vmem>>, vector<1x32x32xf32>
    %122 = vector.shape_cast %121 : vector<1x32x32xf32> to vector<32x32xf32>
    %cst_58 = arith.constant dense<0.000000e+00> : vector<32x32xf32>
    %123 = tpu.matmul %120, %122, %cst_58 {dimension_numbers = #tpu.dot_dimension_numbers<[1], [0], [0], [1], [0, 0, 1, 1], [], []>} : vector<32x32xf32>, vector<32x32xf32>, vector<32x32xf32> -> vector<32x32xf32>
    %124 = arith.addf %106, %123 : vector<32x32xf32>
    %c0_59 = arith.constant 0 : index
    %c0_60 = arith.constant 0 : index
    %125 = vector.load %arg8[%c0_59, %c0_60] : memref<1x32xf32, #tpu.memory_space<vmem>>, vector<1x32xf32>
    %126 = vector.broadcast %125 : vector<1x32xf32> to vector<32x32xf32>
    %127 = arith.addf %124, %126 : vector<32x32xf32>
    %cst_61 = arith.constant 0.000000e+00 : f32
    %128 = vector.broadcast %cst_61 : f32 to vector<32x32xf32>
    %129 = arith.maximumf %127, %128 : vector<32x32xf32>
    %c0_62 = arith.constant 0 : index
    %c0_63 = arith.constant 0 : index
    %130 = vector.load %arg9[%c0_62, %c0_63] : memref<1x32xf32, #tpu.memory_space<vmem>>, vector<1x32xf32>
    %c0_64 = arith.constant 0 : index
    %c0_65 = arith.constant 0 : index
    %131 = vector.load %arg10[%c0_64, %c0_65] : memref<1x32xf32, #tpu.memory_space<vmem>>, vector<1x32xf32>
    %cst_66 = arith.constant dense<0.000000e+00> : vector<32xf32>
    %132 = vector.multi_reduction <add>, %129, %cst_66 [1] : vector<32x32xf32> to vector<32xf32>
    %133 = vector.shape_cast %132 : vector<32xf32> to vector<32x1xf32>
    %cst_67 = arith.constant 3.200000e+01 : f32
    %134 = vector.broadcast %cst_67 : f32 to vector<32x1xf32>
    %135 = arith.divf %133, %134 : vector<32x1xf32>
    %136 = vector.broadcast %135 : vector<32x1xf32> to vector<32x32xf32>
    %137 = arith.subf %129, %136 : vector<32x32xf32>
    %138 = arith.mulf %137, %137 : vector<32x32xf32>
    %cst_68 = arith.constant dense<0.000000e+00> : vector<32xf32>
    %139 = vector.multi_reduction <add>, %138, %cst_68 [1] : vector<32x32xf32> to vector<32xf32>
    %140 = vector.shape_cast %139 : vector<32xf32> to vector<32x1xf32>
    %cst_69 = arith.constant 3.200000e+01 : f32
    %141 = vector.broadcast %cst_69 : f32 to vector<32x1xf32>
    %142 = arith.divf %140, %141 : vector<32x1xf32>
    %143 = vector.broadcast %135 : vector<32x1xf32> to vector<32x32xf32>
    %144 = arith.subf %129, %143 : vector<32x32xf32>
    %cst_70 = arith.constant 9.99999974E-6 : f32
    %145 = vector.broadcast %cst_70 : f32 to vector<32x1xf32>
    %146 = arith.addf %142, %145 : vector<32x1xf32>
    %147 = math.rsqrt %146 : vector<32x1xf32>
    %148 = vector.broadcast %147 : vector<32x1xf32> to vector<32x32xf32>
    %149 = arith.mulf %144, %148 : vector<32x32xf32>
    %150 = vector.broadcast %130 : vector<1x32xf32> to vector<32x32xf32>
    %151 = arith.mulf %149, %150 : vector<32x32xf32>
    %152 = vector.broadcast %131 : vector<1x32xf32> to vector<32x32xf32>
    %153 = arith.addf %151, %152 : vector<32x32xf32>
    %c0_71 = arith.constant 0 : index
    %c0_72 = arith.constant 0 : index
    %154 = vector.load %arg11[%c0_71, %c0_72] : memref<1x32xf32, #tpu.memory_space<vmem>>, vector<1x32xf32>
    %155 = vector.broadcast %154 : vector<1x32xf32> to vector<32x32xf32>
    %156 = arith.mulf %153, %155 : vector<32x32xf32>
    %cst_73 = arith.constant dense<0.000000e+00> : vector<32xf32>
    %157 = vector.multi_reduction <add>, %156, %cst_73 [1] : vector<32x32xf32> to vector<32xf32>
    %c0_74 = arith.constant 0 : index
    %158 = memref.load %arg12[%c0_74] : memref<1xf32, #tpu.memory_space<smem>>
    %159 = vector.broadcast %158 : f32 to vector<32xf32>
    %160 = arith.addf %157, %159 : vector<32xf32>
    %c0_75 = arith.constant 0 : index
    %c0_76 = arith.constant 0 : index
    %c0_77 = arith.constant 0 : index
    %161 = vector.load %arg2[%c0_75, %c0_76, %c0_77] : memref<1x1x32xi32, #tpu.memory_space<vmem>>, vector<1x1x32xi32>
    %162 = vector.shape_cast %161 : vector<1x1x32xi32> to vector<32xi32>
    %c0_i32_78 = arith.constant 0 : i32
    %163 = vector.broadcast %c0_i32_78 : i32 to vector<32xi32>
    %164 = arith.cmpi ne, %162, %163 : vector<32xi32>
    %cst_79 = arith.constant 0.000000e+00 : f32
    %165 = vector.broadcast %cst_79 : f32 to vector<32xf32>
    %166 = arith.select %164, %165, %160 : vector<32xi1>, vector<32xf32>
    %c0_80 = arith.constant 0 : index
    %c0_81 = arith.constant 0 : index
    %c0_82 = arith.constant 0 : index
    %167 = vector.load %arg13[%c0_80, %c0_81, %c0_82] : memref<1x1x32xf32, #tpu.memory_space<vmem>>, vector<1x1x32xf32>
    %168 = vector.shape_cast %167 : vector<1x1x32xf32> to vector<32xf32>
    %169 = vector.shape_cast %166 : vector<32xf32> to vector<1x1x32xf32>
    tpu.vector_store %arg13[%c0_80, %c0_81, %c0_82], %169 {strides = array<i32>} : memref<1x1x32xf32, #tpu.memory_space<vmem>>, vector<1x1x32xf32>,
    return
  }
  func.func @transform_0(%arg0: i32) -> (i32, i32) {
    %c0_i32 = arith.constant 0 : i32
    %c0_i32_0 = arith.constant 0 : i32
    return %arg0, %c0_i32 : i32, i32
  }
  func.func @transform_1(%arg0: i32) -> (i32, i32, i32) {
    %c0_i32 = arith.constant 0 : i32
    %c0_i32_0 = arith.constant 0 : i32
    %c0_i32_1 = arith.constant 0 : i32
    return %arg0, %c0_i32, %c0_i32_0 : i32, i32, i32
  }
  func.func @transform_2(%arg0: i32) -> (i32, i32, i32) {
    %c0_i32 = arith.constant 0 : i32
    %c0_i32_0 = arith.constant 0 : i32
    %c0_i32_1 = arith.constant 0 : i32
    %c0_i32_2 = arith.constant 0 : i32
    return %c0_i32, %c0_i32_0, %c0_i32_1 : i32, i32, i32
  }
  func.func @transform_3(%arg0: i32) -> (i32, i32) {
    %c0_i32 = arith.constant 0 : i32
    %c0_i32_0 = arith.constant 0 : i32
    %c0_i32_1 = arith.constant 0 : i32
    return %c0_i32, %c0_i32_0 : i32, i32
  }
  func.func @transform_4(%arg0: i32) -> (i32, i32) {
    %c0_i32 = arith.constant 0 : i32
    %c0_i32_0 = arith.constant 0 : i32
    %c0_i32_1 = arith.constant 0 : i32
    return %c0_i32, %c0_i32_0 : i32, i32
  }
  func.func @transform_5(%arg0: i32) -> (i32, i32) {
    %c0_i32 = arith.constant 0 : i32
    %c0_i32_0 = arith.constant 0 : i32
    %c0_i32_1 = arith.constant 0 : i32
    return %c0_i32, %c0_i32_0 : i32, i32
  }
  func.func @transform_6(%arg0: i32) -> (i32, i32, i32) {
    %c0_i32 = arith.constant 0 : i32
    %c0_i32_0 = arith.constant 0 : i32
    %c0_i32_1 = arith.constant 0 : i32
    %c0_i32_2 = arith.constant 0 : i32
    return %c0_i32, %c0_i32_0, %c0_i32_1 : i32, i32, i32
  }
  func.func @transform_7(%arg0: i32) -> (i32, i32) {
    %c0_i32 = arith.constant 0 : i32
    %c0_i32_0 = arith.constant 0 : i32
    %c0_i32_1 = arith.constant 0 : i32
    return %c0_i32, %c0_i32_0 : i32, i32
  }
  func.func @transform_8(%arg0: i32) -> (i32, i32) {
    %c0_i32 = arith.constant 0 : i32
    %c0_i32_0 = arith.constant 0 : i32
    %c0_i32_1 = arith.constant 0 : i32
    return %c0_i32, %c0_i32_0 : i32, i32
  }
  func.func @transform_9(%arg0: i32) -> (i32, i32) {
    %c0_i32 = arith.constant 0 : i32
    %c0_i32_0 = arith.constant 0 : i32
    %c0_i32_1 = arith.constant 0 : i32
    return %c0_i32, %c0_i32_0 : i32, i32
  }
  func.func @transform_10(%arg0: i32) -> (i32, i32) {
    %c0_i32 = arith.constant 0 : i32
    %c0_i32_0 = arith.constant 0 : i32
    %c0_i32_1 = arith.constant 0 : i32
    return %c0_i32, %c0_i32_0 : i32, i32
  }
  func.func @transform_11(%arg0: i32) -> i32 {
    %c0_i32 = arith.constant 0 : i32
    %c0_i32_0 = arith.constant 0 : i32
    return %c0_i32 : i32
  }
  func.func @transform_12(%arg0: i32) -> (i32, i32, i32) {
    %c0_i32 = arith.constant 0 : i32
    %c0_i32_0 = arith.constant 0 : i32
    %c0_i32_1 = arith.constant 0 : i32
    return %arg0, %c0_i32, %c0_i32_0 : i32, i32, i32
  }
}

</mosaic_0001>

<llo_original>
// kernel: tpu_custom_call.1
$region0: #{tpu_custom_call.1}
  #allocation0 [shape = 'u32[]', space=smem, size = 0x4, offset = 0x4, fixed_abs, tag = 'smem constant byte address 0x4 - core index']
  #allocation1 [shape = 'u32[72,128]{1,0:T(1,128)}', space=vmem, size = 0x9000, scoped, tag = 'internal scratch']
  #allocation2 [shape = 'f32[1]{0:T(128)S(6)}', space=smem, size = 0x200, scoped, tag = 'scoped memory for tpu_custom_call.1']
  %s0 = inlined_call_operand.hbm [shape: f32[32,32], index: 0, kind: input, shape index: {}]
  %s1 = inlined_call_operand.vmem [shape: s32[1,1,32], index: 1, kind: input, shape index: {}]
  %s2 = inlined_call_operand.hbm [shape: f32[3,32,32], index: 2, kind: input, shape index: {}]
  %s3 = inlined_call_operand.vmem [shape: f32[1,32], index: 3, kind: input, shape index: {}]
  %s4 = inlined_call_operand.vmem [shape: f32[1,32], index: 4, kind: input, shape index: {}]
  %s5 = inlined_call_operand.vmem [shape: f32[1,32], index: 5, kind: input, shape index: {}]
  %s6 = inlined_call_operand.hbm [shape: f32[3,32,32], index: 6, kind: input, shape index: {}]
  %s7 = inlined_call_operand.vmem [shape: f32[1,32], index: 7, kind: input, shape index: {}]
  %s8 = inlined_call_operand.vmem [shape: f32[1,32], index: 8, kind: input, shape index: {}]
  %s9 = inlined_call_operand.vmem [shape: f32[1,32], index: 9, kind: input, shape index: {}]
  %s10 = inlined_call_operand.vmem [shape: f32[1,32], index: 10, kind: input, shape index: {}]
  %s11 = inlined_call_operand.<no memory space> [shape: f32[1], index: 11, kind: input, shape index: {}]
  %s12 = inlined_call_operand.hbm [shape: f32[1,1,32], index: 12, kind: output, shape index: {}]
  %s13 = sld [smem:[#allocation0]]
  $region70: #{tpu_custom_call.1} parent=0
    _
  %s15 = ssub.s32 1, %s13
  %s16 = scalar_select 0, %s15, %s13
  %17 = sst [smem:[#allocation2]] %s11
  $region1: #{tpu_custom_call.1} parent=0
    #allocation3 [shape = 'u8[16384]{0}', space=vmem, size = 0x4000, scoped, tag = 'input window, operand 0, single buffered']
    #allocation4 [shape = 's32[1]{0}', space=sflag, size = 0x4, scoped, tag = 'scoped memory for tpu_custom_call.1']
    #allocation5 [shape = 's32[1]{0}', space=sflag, size = 0x4, scoped, tag = 'scoped memory for tpu_custom_call.1']
    #allocation6 [shape = 'u8[49152]{0}', space=vmem, size = 0xc000, scoped, tag = 'input window, operand 2, single buffered']
    #allocation7 [shape = 's32[1]{0}', space=sflag, size = 0x4, scoped, tag = 'scoped memory for tpu_custom_call.1']
    #allocation8 [shape = 'u8[49152]{0}', space=vmem, size = 0xc000, scoped, tag = 'input window, operand 6, single buffered']
    #allocation9 [shape = 'u8[512]{0}', space=vmem, size = 0x400, scoped, tag = 'output window, operand 0, single buffered']
    %18 = vsyncpa [#allocation4], 0
    %19 = vsyncpa [#allocation7], 0
    %20 = vsyncpa [#allocation5], 0
    // Predicated region
    $region2: #{tpu_custom_call.1} parent=1 // pred_check
      _
    $region3: #{tpu_custom_call.1} parent=1 // pred_check_branch
      %22 = sbr.rel (0) target = $region5
    $region4: #{tpu_custom_call.1} parent=1 // pred_region
      %24 = vsyncadd [#allocation4], 0
      %s25 = sshll.u32 %s0, 4
      %s26 = int_to_ptr.hbm [resolvable:$true] %s25
      %s27 = sshll.u32 [#allocation3], 4
      %s28 = int_to_ptr.vmem [resolvable:$true] %s27
      %33 = dma.hbm_to_vmem [thread:$0]  %s26, 512, %s28, [#allocation4], 128, 128, 8
    $region5: #{tpu_custom_call.1} parent=1 // pred_fallthru
      _
    // Predicated region
    $region6: #{tpu_custom_call.1} parent=1 // pred_check
      _
    $region7: #{tpu_custom_call.1} parent=1 // pred_check_branch
      %35 = sbr.rel (0) target = $region9
    $region8: #{tpu_custom_call.1} parent=1 // pred_region
      _
    $region9: #{tpu_custom_call.1} parent=1 // pred_fallthru
      _
    // Predicated region
    $region10: #{tpu_custom_call.1} parent=1 // pred_check
      _
    $region11: #{tpu_custom_call.1} parent=1 // pred_check_branch
      %37 = sbr.rel (0) target = $region13
    $region12: #{tpu_custom_call.1} parent=1 // pred_region
      %39 = vsyncadd [#allocation7], 0
      %s40 = sshll.u32 %s2, 4
      %s41 = int_to_ptr.hbm [resolvable:$true] %s40
      %s42 = sshll.u32 [#allocation6], 4
      %s43 = int_to_ptr.vmem [resolvable:$true] %s42
      %48 = dma.hbm_to_vmem [thread:$0]  %s41, 1536, %s43, [#allocation7], 128, 128, 8
    $region13: #{tpu_custom_call.1} parent=1 // pred_fallthru
      _
    // Predicated region
    $region14: #{tpu_custom_call.1} parent=1 // pred_check
      _
    $region15: #{tpu_custom_call.1} parent=1 // pred_check_branch
      %50 = sbr.rel (0) target = $region17
    $region16: #{tpu_custom_call.1} parent=1 // pred_region
      _
    $region17: #{tpu_custom_call.1} parent=1 // pred_fallthru
      _
    // Predicated region
    $region18: #{tpu_custom_call.1} parent=1 // pred_check
      _
    $region19: #{tpu_custom_call.1} parent=1 // pred_check_branch
      %52 = sbr.rel (0) target = $region21
    $region20: #{tpu_custom_call.1} parent=1 // pred_region
      _
    $region21: #{tpu_custom_call.1} parent=1 // pred_fallthru
      _
    // Predicated region
    $region22: #{tpu_custom_call.1} parent=1 // pred_check
      _
    $region23: #{tpu_custom_call.1} parent=1 // pred_check_branch
      %54 = sbr.rel (0) target = $region25
    $region24: #{tpu_custom_call.1} parent=1 // pred_region
      _
    $region25: #{tpu_custom_call.1} parent=1 // pred_fallthru
      _
    // Predicated region
    $region26: #{tpu_custom_call.1} parent=1 // pred_check
      _
    $region27: #{tpu_custom_call.1} parent=1 // pred_check_branch
      %56 = sbr.rel (0) target = $region29
    $region28: #{tpu_custom_call.1} parent=1 // pred_region
      %58 = vsyncadd [#allocation7], 0
      %s59 = sshll.u32 %s6, 4
      %s60 = int_to_ptr.hbm [resolvable:$true] %s59
      %s61 = sshll.u32 [#allocation8], 4
      %s62 = int_to_ptr.vmem [resolvable:$true] %s61
      %67 = dma.hbm_to_vmem [thread:$0]  %s60, 1536, %s62, [#allocation7], 128, 128, 8
    $region29: #{tpu_custom_call.1} parent=1 // pred_fallthru
      _
    // Predicated region
    $region30: #{tpu_custom_call.1} parent=1 // pred_check
      _
    $region31: #{tpu_custom_call.1} parent=1 // pred_check_branch
      %69 = sbr.rel (0) target = $region33
    $region32: #{tpu_custom_call.1} parent=1 // pred_region
      _
    $region33: #{tpu_custom_call.1} parent=1 // pred_fallthru
      _
    // Predicated region
    $region34: #{tpu_custom_call.1} parent=1 // pred_check
      _
    $region35: #{tpu_custom_call.1} parent=1 // pred_check_branch
      %71 = sbr.rel (0) target = $region37
    $region36: #{tpu_custom_call.1} parent=1 // pred_region
      _
    $region37: #{tpu_custom_call.1} parent=1 // pred_fallthru
      _
    // Predicated region
    $region38: #{tpu_custom_call.1} parent=1 // pred_check
      _
    $region39: #{tpu_custom_call.1} parent=1 // pred_check_branch
      %73 = sbr.rel (0) target = $region41
    $region40: #{tpu_custom_call.1} parent=1 // pred_region
      _
    $region41: #{tpu_custom_call.1} parent=1 // pred_fallthru
      _
    // Predicated region
    $region42: #{tpu_custom_call.1} parent=1 // pred_check
      _
    $region43: #{tpu_custom_call.1} parent=1 // pred_check_branch
      %75 = sbr.rel (0) target = $region45
    $region44: #{tpu_custom_call.1} parent=1 // pred_region
      _
    $region45: #{tpu_custom_call.1} parent=1 // pred_fallthru
      _
    // Predicated region
    $region46: #{tpu_custom_call.1} parent=1 // pred_check
      _
    $region47: #{tpu_custom_call.1} parent=1 // pred_check_branch
      %77 = sbr.rel (0) target = $region49
    $region48: #{tpu_custom_call.1} parent=1 // pred_region
      _
    $region49: #{tpu_custom_call.1} parent=1 // pred_fallthru
      _
    // Predicated region
    $region50: #{tpu_custom_call.1} parent=1 // pred_check
      _
    $region51: #{tpu_custom_call.1} parent=1 // pred_check_branch
      %79 = sbr.rel (0) target = $region53
    $region52: #{tpu_custom_call.1} parent=1 // pred_region
      %81 = dma.done [#allocation4], 512
    $region53: #{tpu_custom_call.1} parent=1 // pred_fallthru
      _
    // Predicated region
    $region54: #{tpu_custom_call.1} parent=1 // pred_check
      _
    $region55: #{tpu_custom_call.1} parent=1 // pred_check_branch
      %83 = sbr.rel (0) target = $region57
    $region56: #{tpu_custom_call.1} parent=1 // pred_region
      %85 = dma.done [#allocation7], 1536
    $region57: #{tpu_custom_call.1} parent=1 // pred_fallthru
      _
    // Predicated region
    $region58: #{tpu_custom_call.1} parent=1 // pred_check
      _
    $region59: #{tpu_custom_call.1} parent=1 // pred_check_branch
      %87 = sbr.rel (0) target = $region61
    $region60: #{tpu_custom_call.1} parent=1 // pred_region
      %89 = dma.done [#allocation7], 1536
    $region61: #{tpu_custom_call.1} parent=1 // pred_fallthru
      _
    %v90 = vld [vmem:[#allocation3] sm:$0xff]
    %v91 = vld [vmem:[#allocation3 + $0x8] sm:$0xff]
    %v92 = vld [vmem:[#allocation3 + $0x10] sm:$0xff]
    %v93 = vld [vmem:[#allocation3 + $0x18] sm:$0xff]
    %v94 = vlaneseq
    %v95 = vshrl.u32 %v94, 7
    %v96 = vadd.s32 %v95, 8
    %v97 = vadd.s32 %v95, 16
    %v98 = vadd.s32 %v95, 24
    %vm99 = vcmp.lt.s32.totalorder %v95, 0
    %v100 = vsub.s32 0, %v95
    %v101 = vsel %vm99, %v100, %v95
    %v102 = vshrl.u32 %v101, 4
    %v103 = vand.u32 %v101, 15
    %v104 = vsub.s32 0, %v103
    %v105 = vsel %vm99, %v104, %v103
    %vm106 = vcmp.lt.s32.totalorder %v96, 0
    %v107 = vsub.s32 0, %v96
    %v108 = vsel %vm106, %v107, %v96
    %v109 = vshrl.u32 %v108, 4
    %v110 = vand.u32 %v108, 15
    %v111 = vsub.s32 0, %v110
    %v112 = vsel %vm106, %v111, %v110
    %vm113 = vcmp.lt.s32.totalorder %v97, 0
    %v114 = vsub.s32 0, %v97
    %v115 = vsel %vm113, %v114, %v97
    %v116 = vshrl.u32 %v115, 4
    %v117 = vand.u32 %v115, 15
    %v118 = vsub.s32 0, %v117
    %v119 = vsel %vm113, %v118, %v117
    %vm120 = vcmp.lt.s32.totalorder %v98, 0
    %v121 = vsub.s32 0, %v98
    %v122 = vsel %vm120, %v121, %v98
    %v123 = vshrl.u32 %v122, 4
    %v124 = vand.u32 %v122, 15
    %v125 = vsub.s32 0, %v124
    %v126 = vsel %vm120, %v125, %v124
    %vm127 = vcmp.ne.s32.totalorder %v105, 0
    %vm128 = vcmp.ne.s32.totalorder %v112, 0
    %vm129 = vcmp.ne.s32.totalorder %v119, 0
    %vm130 = vcmp.ne.s32.totalorder %v126, 0
    %vm131 = vcmp.lt.s32.totalorder %v105, 0
    %vm132 = vcmp.lt.s32.totalorder %v112, 0
    %vm133 = vcmp.lt.s32.totalorder %v119, 0
    %vm134 = vcmp.lt.s32.totalorder %v126, 0
    %vm135 = vmand %vm131, %vm127
    %vm136 = vmand %vm132, %vm128
    %vm137 = vmand %vm133, %vm129
    %vm138 = vmand %vm134, %vm130
    %v139 = vadd.s32 %v105, 16
    %v140 = vadd.s32 %v112, 16
    %v141 = vadd.s32 %v119, 16
    %v142 = vadd.s32 %v126, 16
    %v143 = vsel %vm135, %v139, %v105
    %v144 = vsel %vm136, %v140, %v112
    %v145 = vsel %vm137, %v141, %v119
    %v146 = vsel %vm138, %v142, %v126
    %v147 = vrot.slane %v90, 7
    %v148 = vrot.slane %v91, 7
    %v149 = vrot.slane %v92, 7
    %v150 = vrot.slane %v93, 7
    %vm151 = vcmp.lt.s32.totalorder %v95, 1
    %v152 = vsel %vm151, %v149, %v150
    %v153 = vsel %vm151, %v148, %v149
    %v154 = vsel %vm151, %v147, %v148
    %v155 = vsel %vm151, %v150, %v147
    %v156 = vadd.s32 %v143, 4294967295
    %v157 = vadd.s32 %v144, 4294967295
    %v158 = vadd.s32 %v145, 4294967295
    %v159 = vadd.s32 %v146, 4294967295
    %vm160 = vcmp.ge.s32.totalorder %v156, 0
    %vm161 = vcmp.ge.s32.totalorder %v157, 0
    %vm162 = vcmp.ge.s32.totalorder %v158, 0
    %vm163 = vcmp.ge.s32.totalorder %v159, 0
    %vm164 = vcmp.lt.s32.totalorder %v156, 16
    %vm165 = vcmp.lt.s32.totalorder %v157, 16
    %vm166 = vcmp.lt.s32.totalorder %v158, 16
    %vm167 = vcmp.lt.s32.totalorder %v159, 16
    %vm168 = vmand %vm160, %vm164
    %vm169 = vmand %vm161, %vm165
    %vm170 = vmand %vm162, %vm166
    %vm171 = vmand %vm163, %vm167
    %v172 = vsel %vm168, 1, 0
    %v173 = vsel %vm169, 1, 0
    %v174 = vsel %vm170, 1, 0
    %v175 = vsel %vm171, 1, 0
    %vm176 = vcmp.eq.s32.totalorder %v172, 1
    %vm177 = vcmp.eq.s32.totalorder %v173, 1
    %vm178 = vcmp.eq.s32.totalorder %v174, 1
    %vm179 = vcmp.eq.s32.totalorder %v175, 1
    %v180 = vsel %vm176, %v155, 0.0
    %v181 = vsel %vm177, %v154, 0.0
    %v182 = vsel %vm178, %v153, 0.0
    %v183 = vsel %vm179, %v152, 0.0
    %v184 = vld [vmem:[#allocation6] sm:$0xff]
    %v185 = vld [vmem:[#allocation6 + $0x8] sm:$0xff]
    %v186 = vld [vmem:[#allocation6 + $0x10] sm:$0xff]
    %v187 = vld [vmem:[#allocation6 + $0x18] sm:$0xff]
    %s188 = scalar_lea.vmem [#allocation6], 32
    %v189 = vld [vmem:[%s188] sm:$0xff]
    %v190 = vld [vmem:[%s188 + $0x8] sm:$0xff]
    %v191 = vld [vmem:[%s188 + $0x10] sm:$0xff]
    %v192 = vld [vmem:[%s188 + $0x18] sm:$0xff]
    %vm193 = vcmask 261120
    %v195 = vsel %vm193, %v90, 0
    %v198 = vsel %vm193, %v91, 0
    %v201 = vsel %vm193, %v92, 0
    %v204 = vsel %vm193, %v93, 0
    %206 = vmatpush.msra.mxu0 0.0
    %207 = vmatpush.msra.mxu0 0.0
    %208 = vmatpush.msra.mxu0 0.0
    %209 = vmatpush.msra.mxu0 0.0
    %210 = vmatpush.msra.mxu0 0.0
    %211 = vmatpush.msra.mxu0 0.0
    %212 = vmatpush.msra.mxu0 0.0
    %213 = vmatpush.msra.mxu0 0.0
    %214 = vmatpush.msra.mxu0 0.0
    %215 = vmatpush.msra.mxu0 0.0
    %216 = vmatpush.msra.mxu0 0.0
    %217 = vmatpush.msra.mxu0 0.0
    %218 = vmatpush.msra.mxu0 %v192
    %219 = vmatpush.msra.mxu0 %v191
    %220 = vmatpush.msra.mxu0 %v190
    %221 = vmatpush.msra.mxu0 %v189
    %222 = vmatmul.f32.gmra.mxu0 %v195
    %v223 = vpop.f32.mrf.mxu0
    %v224 = vadd.f32 0.0, %v223
    %225 = vmatmul.f32.gmra.mxu0 %v198
    %v226 = vpop.f32.mrf.mxu0
    %v227 = vadd.f32 0.0, %v226
    %228 = vmatmul.f32.gmra.mxu0 %v201
    %v229 = vpop.f32.mrf.mxu0
    %v230 = vadd.f32 0.0, %v229
    %231 = vmatmul.f32.gmra.mxu0 %v204
    %v232 = vpop.f32.mrf.mxu0
    %v233 = vadd.f32 0.0, %v232
    %234 = vdwg.mxu0
    %v236 = vsel %vm193, %v180, 0
    %v239 = vsel %vm193, %v181, 0
    %v242 = vsel %vm193, %v182, 0
    %v245 = vsel %vm193, %v183, 0
    %247 = vmatpush.msra.mxu0 0.0
    %248 = vmatpush.msra.mxu0 0.0
    %249 = vmatpush.msra.mxu0 0.0
    %250 = vmatpush.msra.mxu0 0.0
    %251 = vmatpush.msra.mxu0 0.0
    %252 = vmatpush.msra.mxu0 0.0
    %253 = vmatpush.msra.mxu0 0.0
    %254 = vmatpush.msra.mxu0 0.0
    %255 = vmatpush.msra.mxu0 0.0
    %256 = vmatpush.msra.mxu0 0.0
    %257 = vmatpush.msra.mxu0 0.0
    %258 = vmatpush.msra.mxu0 0.0
    %259 = vmatpush.msra.mxu0 %v187
    %260 = vmatpush.msra.mxu0 %v186
    %261 = vmatpush.msra.mxu0 %v185
    %262 = vmatpush.msra.mxu0 %v184
    %263 = vmatmul.f32.gmra.mxu0 %v236
    %v264 = vpop.f32.mrf.mxu0
    %v265 = vadd.f32 %v224, %v264
    %266 = vmatmul.f32.gmra.mxu0 %v239
    %v267 = vpop.f32.mrf.mxu0
    %v268 = vadd.f32 %v227, %v267
    %269 = vmatmul.f32.gmra.mxu0 %v242
    %v270 = vpop.f32.mrf.mxu0
    %v271 = vadd.f32 %v230, %v270
    %272 = vmatmul.f32.gmra.mxu0 %v245
    %v273 = vpop.f32.mrf.mxu0
    %v274 = vadd.f32 %v233, %v273
    %275 = vdwg.mxu0
    %v276 = vrot.slane %v90, 1
    %v277 = vrot.slane %v91, 1
    %v278 = vrot.slane %v92, 1
    %v279 = vrot.slane %v93, 1
    %vm280 = vcmp.lt.s32.totalorder %v95, 7
    %v281 = vsel %vm280, %v278, %v279
    %v282 = vsel %vm280, %v277, %v278
    %v283 = vsel %vm280, %v276, %v277
    %v284 = vsel %vm280, %v279, %v276
    %v285 = vadd.s32 %v143, 1
    %v286 = vadd.s32 %v144, 1
    %v287 = vadd.s32 %v145, 1
    %v288 = vadd.s32 %v146, 1
    %vm289 = vcmp.ge.s32.totalorder %v285, 0
    %vm290 = vcmp.ge.s32.totalorder %v286, 0
    %vm291 = vcmp.ge.s32.totalorder %v287, 0
    %vm292 = vcmp.ge.s32.totalorder %v288, 0
    %vm293 = vcmp.lt.s32.totalorder %v285, 16
    %vm294 = vcmp.lt.s32.totalorder %v286, 16
    %vm295 = vcmp.lt.s32.totalorder %v287, 16
    %vm296 = vcmp.lt.s32.totalorder %v288, 16
    %vm297 = vmand %vm289, %vm293
    %vm298 = vmand %vm290, %vm294
    %vm299 = vmand %vm291, %vm295
    %vm300 = vmand %vm292, %vm296
    %v301 = vsel %vm297, 1, 0
    %v302 = vsel %vm298, 1, 0
    %v303 = vsel %vm299, 1, 0
    %v304 = vsel %vm300, 1, 0
    %vm305 = vcmp.eq.s32.totalorder %v301, 1
    %vm306 = vcmp.eq.s32.totalorder %v302, 1
    %vm307 = vcmp.eq.s32.totalorder %v303, 1
    %vm308 = vcmp.eq.s32.totalorder %v304, 1
    %v309 = vsel %vm305, %v283, 0.0
    %v310 = vsel %vm306, %v282, 0.0
    %v311 = vsel %vm307, %v281, 0.0
    %v312 = vsel %vm308, %v284, 0.0
    %s313 = scalar_lea.vmem [#allocation6], 64
    %v314 = vld [vmem:[%s313] sm:$0xff]
    %v315 = vld [vmem:[%s313 + $0x8] sm:$0xff]
    %v316 = vld [vmem:[%s313 + $0x10] sm:$0xff]
    %v317 = vld [vmem:[%s313 + $0x18] sm:$0xff]
    %v319 = vsel %vm193, %v309, 0
    %v322 = vsel %vm193, %v310, 0
    %v325 = vsel %vm193, %v311, 0
    %v328 = vsel %vm193, %v312, 0
    %330 = vmatpush.msra.mxu0 0.0
    %331 = vmatpush.msra.mxu0 0.0
    %332 = vmatpush.msra.mxu0 0.0
    %333 = vmatpush.msra.mxu0 0.0
    %334 = vmatpush.msra.mxu0 0.0
    %335 = vmatpush.msra.mxu0 0.0
    %336 = vmatpush.msra.mxu0 0.0
    %337 = vmatpush.msra.mxu0 0.0
    %338 = vmatpush.msra.mxu0 0.0
    %339 = vmatpush.msra.mxu0 0.0
    %340 = vmatpush.msra.mxu0 0.0
    %341 = vmatpush.msra.mxu0 0.0
    %342 = vmatpush.msra.mxu0 %v317
    %343 = vmatpush.msra.mxu0 %v316
    %344 = vmatpush.msra.mxu0 %v315
    %345 = vmatpush.msra.mxu0 %v314
    %346 = vmatmul.f32.gmra.mxu0 %v319
    %v347 = vpop.f32.mrf.mxu0
    %v348 = vadd.f32 0.0, %v347
    %349 = vmatmul.f32.gmra.mxu0 %v322
    %v350 = vpop.f32.mrf.mxu0
    %v351 = vadd.f32 0.0, %v350
    %352 = vmatmul.f32.gmra.mxu0 %v325
    %v353 = vpop.f32.mrf.mxu0
    %v354 = vadd.f32 0.0, %v353
    %355 = vmatmul.f32.gmra.mxu0 %v328
    %v356 = vpop.f32.mrf.mxu0
    %v357 = vadd.f32 0.0, %v356
    %358 = vdwg.mxu0
    %v359 = vadd.f32 %v265, %v348
    %v360 = vadd.f32 %v268, %v351
    %v361 = vadd.f32 %v271, %v354
    %v362 = vadd.f32 %v274, %v357
    %v363 = vld [vmem:[%s3] sm:$0x1]
    %v365 = vperm.slane %v363, 0
    %v367 = vadd.f32 %v359, %v365
    %v368 = vadd.f32 %v360, %v365
    %v369 = vadd.f32 %v361, %v365
    %v370 = vadd.f32 %v362, %v365
    %v371 = vmax.f32 %v367, 0.0
    %v372 = vmax.f32 %v368, 0.0
    %v373 = vmax.f32 %v369, 0.0
    %v374 = vmax.f32 %v370, 0.0
    %v375 = vld [vmem:[%s4] sm:$0x1]
    %v376 = vld [vmem:[%s5] sm:$0x1]
    %v377 = vsel %vm193, %v371, 0.0
    %378 = vadd.xlane.f32.xlu0 %v377
    %v379 = vpop.xlane.xlu0 %378
    %v380 = vsel %vm193, %v372, 0.0
    %381 = vadd.xlane.f32.xlu0 %v380
    %v382 = vpop.xlane.xlu0 %381
    %v383 = vsel %vm193, %v373, 0.0
    %384 = vadd.xlane.f32.xlu0 %v383
    %v385 = vpop.xlane.xlu0 %384
    %v386 = vsel %vm193, %v374, 0.0
    %387 = vadd.xlane.f32.xlu0 %v386
    %v388 = vpop.xlane.xlu0 %387
    %v389 = vrcp.pop 32.0
    %v390 = vmul.f32 32.0, %v389
    %v391 = vsub.f32 1.0, %v390
    %v392 = vmul.f32 %v389, %v391
    %v393 = vadd.f32 %v389, %v392
    %vm394 = vweird.f32 %v389
    %v395 = vsel %vm394, %v389, %v393
    %v396 = vmul.f32 %v379, %v395
    %v397 = vmul.f32 %v382, %v395
    %v398 = vmul.f32 %v385, %v395
    %v399 = vmul.f32 %v388, %v395
    %v400 = vsub.f32 %v371, %v396
    %v401 = vsub.f32 %v372, %v397
    %v402 = vsub.f32 %v373, %v398
    %v403 = vsub.f32 %v374, %v399
    %v404 = vmul.f32 %v400, %v400
    %v405 = vmul.f32 %v401, %v401
    %v406 = vmul.f32 %v402, %v402
    %v407 = vmul.f32 %v403, %v403
    %v408 = vsel %vm193, %v404, 0.0
    %409 = vadd.xlane.f32.xlu0 %v408
    %v410 = vpop.xlane.xlu0 %409
    %v411 = vsel %vm193, %v405, 0.0
    %412 = vadd.xlane.f32.xlu0 %v411
    %v413 = vpop.xlane.xlu0 %412
    %v414 = vsel %vm193, %v406, 0.0
    %415 = vadd.xlane.f32.xlu0 %v414
    %v416 = vpop.xlane.xlu0 %415
    %v417 = vsel %vm193, %v407, 0.0
    %418 = vadd.xlane.f32.xlu0 %v417
    %v419 = vpop.xlane.xlu0 %418
    %v420 = vmul.f32 %v410, %v395
    %v421 = vmul.f32 %v413, %v395
    %v422 = vmul.f32 %v416, %v395
    %v423 = vmul.f32 %v419, %v395
    %v424 = vadd.f32 %v420, 1e-05
    %v425 = vadd.f32 %v421, 1e-05
    %v426 = vadd.f32 %v422, 1e-05
    %v427 = vadd.f32 %v423, 1e-05
    %v428 = vrsqrt.pop %v424
    %v429 = vmul.f32 %v428, %v424
    %v430 = vmul.f32 %v429, %v428
    %v431 = vmul.f32 0.5, %v430
    %v432 = vsub.f32 1.5, %v431
    %v433 = vmul.f32 %v428, %v432
    %vm434 = vweird.f32 %v424
    %vm435 = vweird.f32 %v428
    %vm436 = vmor %vm434, %vm435
    %v437 = vsel %vm436, %v428, %v433
    %v438 = vrsqrt.pop %v425
    %v439 = vmul.f32 %v438, %v425
    %v440 = vmul.f32 %v439, %v438
    %v441 = vmul.f32 0.5, %v440
    %v442 = vsub.f32 1.5, %v441
    %v443 = vmul.f32 %v438, %v442
    %vm444 = vweird.f32 %v425
    %vm445 = vweird.f32 %v438
    %vm446 = vmor %vm444, %vm445
    %v447 = vsel %vm446, %v438, %v443
    %v448 = vrsqrt.pop %v426
    %v449 = vmul.f32 %v448, %v426
    %v450 = vmul.f32 %v449, %v448
    %v451 = vmul.f32 0.5, %v450
    %v452 = vsub.f32 1.5, %v451
    %v453 = vmul.f32 %v448, %v452
    %vm454 = vweird.f32 %v426
    %vm455 = vweird.f32 %v448
    %vm456 = vmor %vm454, %vm455
    %v457 = vsel %vm456, %v448, %v453
    %v458 = vrsqrt.pop %v427
    %v459 = vmul.f32 %v458, %v427
    %v460 = vmul.f32 %v459, %v458
    %v461 = vmul.f32 0.5, %v460
    %v462 = vsub.f32 1.5, %v461
    %v463 = vmul.f32 %v458, %v462
    %vm464 = vweird.f32 %v427
    %vm465 = vweird.f32 %v458
    %vm466 = vmor %vm464, %vm465
    %v467 = vsel %vm466, %v458, %v463
    %v468 = vmul.f32 %v400, %v437
    %v469 = vmul.f32 %v401, %v447
    %v470 = vmul.f32 %v402, %v457
    %v471 = vmul.f32 %v403, %v467
    %v473 = vperm.slane %v375, 0
    %v475 = vmul.f32 %v468, %v473
    %v476 = vmul.f32 %v469, %v473
    %v477 = vmul.f32 %v470, %v473
    %v478 = vmul.f32 %v471, %v473
    %v480 = vperm.slane %v376, 0
    %v482 = vadd.f32 %v475, %v480
    %v483 = vadd.f32 %v476, %v480
    %v484 = vadd.f32 %v477, %v480
    %v485 = vadd.f32 %v478, %v480
    %v486 = vrot.slane %v482, 7
    %v487 = vrot.slane %v483, 7
    %v488 = vrot.slane %v484, 7
    %v489 = vrot.slane %v485, 7
    %v490 = vsel %vm151, %v488, %v489
    %v491 = vsel %vm151, %v487, %v488
    %v492 = vsel %vm151, %v486, %v487
    %v493 = vsel %vm151, %v489, %v486
    %v494 = vsel %vm176, %v493, 0.0
    %v495 = vsel %vm177, %v492, 0.0
    %v496 = vsel %vm178, %v491, 0.0
    %v497 = vsel %vm179, %v490, 0.0
    %v498 = vld [vmem:[#allocation8] sm:$0xff]
    %v499 = vld [vmem:[#allocation8 + $0x8] sm:$0xff]
    %v500 = vld [vmem:[#allocation8 + $0x10] sm:$0xff]
    %v501 = vld [vmem:[#allocation8 + $0x18] sm:$0xff]
    %s502 = scalar_lea.vmem [#allocation8], 32
    %v503 = vld [vmem:[%s502] sm:$0xff]
    %v504 = vld [vmem:[%s502 + $0x8] sm:$0xff]
    %v505 = vld [vmem:[%s502 + $0x10] sm:$0xff]
    %v506 = vld [vmem:[%s502 + $0x18] sm:$0xff]
    %v508 = vsel %vm193, %v482, 0
    %v511 = vsel %vm193, %v483, 0
    %v514 = vsel %vm193, %v484, 0
    %v517 = vsel %vm193, %v485, 0
    %519 = vmatpush.msra.mxu0 0.0
    %520 = vmatpush.msra.mxu0 0.0
    %521 = vmatpush.msra.mxu0 0.0
    %522 = vmatpush.msra.mxu0 0.0
    %523 = vmatpush.msra.mxu0 0.0
    %524 = vmatpush.msra.mxu0 0.0
    %525 = vmatpush.msra.mxu0 0.0
    %526 = vmatpush.msra.mxu0 0.0
    %527 = vmatpush.msra.mxu0 0.0
    %528 = vmatpush.msra.mxu0 0.0
    %529 = vmatpush.msra.mxu0 0.0
    %530 = vmatpush.msra.mxu0 0.0
    %531 = vmatpush.msra.mxu0 %v506
    %532 = vmatpush.msra.mxu0 %v505
    %533 = vmatpush.msra.mxu0 %v504
    %534 = vmatpush.msra.mxu0 %v503
    %535 = vmatmul.f32.gmra.mxu0 %v508
    %v536 = vpop.f32.mrf.mxu0
    %v537 = vadd.f32 0.0, %v536
    %538 = vmatmul.f32.gmra.mxu0 %v511
    %v539 = vpop.f32.mrf.mxu0
    %v540 = vadd.f32 0.0, %v539
    %541 = vmatmul.f32.gmra.mxu0 %v514
    %v542 = vpop.f32.mrf.mxu0
    %v543 = vadd.f32 0.0, %v542
    %544 = vmatmul.f32.gmra.mxu0 %v517
    %v545 = vpop.f32.mrf.mxu0
    %v546 = vadd.f32 0.0, %v545
    %547 = vdwg.mxu0
    %v549 = vsel %vm193, %v494, 0
    %v552 = vsel %vm193, %v495, 0
    %v555 = vsel %vm193, %v496, 0
    %v558 = vsel %vm193, %v497, 0
    %560 = vmatpush.msra.mxu0 0.0
    %561 = vmatpush.msra.mxu0 0.0
    %562 = vmatpush.msra.mxu0 0.0
    %563 = vmatpush.msra.mxu0 0.0
    %564 = vmatpush.msra.mxu0 0.0
    %565 = vmatpush.msra.mxu0 0.0
    %566 = vmatpush.msra.mxu0 0.0
    %567 = vmatpush.msra.mxu0 0.0
    %568 = vmatpush.msra.mxu0 0.0
    %569 = vmatpush.msra.mxu0 0.0
    %570 = vmatpush.msra.mxu0 0.0
    %571 = vmatpush.msra.mxu0 0.0
    %572 = vmatpush.msra.mxu0 %v501
    %573 = vmatpush.msra.mxu0 %v500
    %574 = vmatpush.msra.mxu0 %v499
    %575 = vmatpush.msra.mxu0 %v498
    %576 = vmatmul.f32.gmra.mxu0 %v549
    %v577 = vpop.f32.mrf.mxu0
    %v578 = vadd.f32 %v537, %v577
    %579 = vmatmul.f32.gmra.mxu0 %v552
    %v580 = vpop.f32.mrf.mxu0
    %v581 = vadd.f32 %v540, %v580
    %582 = vmatmul.f32.gmra.mxu0 %v555
    %v583 = vpop.f32.mrf.mxu0
    %v584 = vadd.f32 %v543, %v583
    %585 = vmatmul.f32.gmra.mxu0 %v558
    %v586 = vpop.f32.mrf.mxu0
    %v587 = vadd.f32 %v546, %v586
    %588 = vdwg.mxu0
    %v589 = vrot.slane %v482, 1
    %v590 = vrot.slane %v483, 1
    %v591 = vrot.slane %v484, 1
    %v592 = vrot.slane %v485, 1
    %v593 = vsel %vm280, %v591, %v592
    %v594 = vsel %vm280, %v590, %v591
    %v595 = vsel %vm280, %v589, %v590
    %v596 = vsel %vm280, %v592, %v589
    %v597 = vsel %vm305, %v595, 0.0
    %v598 = vsel %vm306, %v594, 0.0
    %v599 = vsel %vm307, %v593, 0.0
    %v600 = vsel %vm308, %v596, 0.0
    %s601 = scalar_lea.vmem [#allocation8], 64
    %v602 = vld [vmem:[%s601] sm:$0xff]
    %v603 = vld [vmem:[%s601 + $0x8] sm:$0xff]
    %v604 = vld [vmem:[%s601 + $0x10] sm:$0xff]
    %v605 = vld [vmem:[%s601 + $0x18] sm:$0xff]
    %v607 = vsel %vm193, %v597, 0
    %v610 = vsel %vm193, %v598, 0
    %v613 = vsel %vm193, %v599, 0
    %v616 = vsel %vm193, %v600, 0
    %618 = vmatpush.msra.mxu0 0.0
    %619 = vmatpush.msra.mxu0 0.0
    %620 = vmatpush.msra.mxu0 0.0
    %621 = vmatpush.msra.mxu0 0.0
    %622 = vmatpush.msra.mxu0 0.0
    %623 = vmatpush.msra.mxu0 0.0
    %624 = vmatpush.msra.mxu0 0.0
    %625 = vmatpush.msra.mxu0 0.0
    %626 = vmatpush.msra.mxu0 0.0
    %627 = vmatpush.msra.mxu0 0.0
    %628 = vmatpush.msra.mxu0 0.0
    %629 = vmatpush.msra.mxu0 0.0
    %630 = vmatpush.msra.mxu0 %v605
    %631 = vmatpush.msra.mxu0 %v604
    %632 = vmatpush.msra.mxu0 %v603
    %633 = vmatpush.msra.mxu0 %v602
    %634 = vmatmul.f32.gmra.mxu0 %v607
    %v635 = vpop.f32.mrf.mxu0
    %v636 = vadd.f32 0.0, %v635
    %637 = vmatmul.f32.gmra.mxu0 %v610
    %v638 = vpop.f32.mrf.mxu0
    %v639 = vadd.f32 0.0, %v638
    %640 = vmatmul.f32.gmra.mxu0 %v613
    %v641 = vpop.f32.mrf.mxu0
    %v642 = vadd.f32 0.0, %v641
    %643 = vmatmul.f32.gmra.mxu0 %v616
    %v644 = vpop.f32.mrf.mxu0
    %v645 = vadd.f32 0.0, %v644
    %646 = vdwg.mxu0
    %v647 = vadd.f32 %v578, %v636
    %v648 = vadd.f32 %v581, %v639
    %v649 = vadd.f32 %v584, %v642
    %v650 = vadd.f32 %v587, %v645
    %v651 = vld [vmem:[%s7] sm:$0x1]
    %v653 = vperm.slane %v651, 0
    %v655 = vadd.f32 %v647, %v653
    %v656 = vadd.f32 %v648, %v653
    %v657 = vadd.f32 %v649, %v653
    %v658 = vadd.f32 %v650, %v653
    %v659 = vmax.f32 %v655, 0.0
    %v660 = vmax.f32 %v656, 0.0
    %v661 = vmax.f32 %v657, 0.0
    %v662 = vmax.f32 %v658, 0.0
    %v663 = vld [vmem:[%s8] sm:$0x1]
    %v664 = vld [vmem:[%s9] sm:$0x1]
    %v665 = vsel %vm193, %v659, 0.0
    %666 = vadd.xlane.f32.xlu0 %v665
    %v667 = vpop.xlane.xlu0 %666
    %v668 = vsel %vm193, %v660, 0.0
    %669 = vadd.xlane.f32.xlu0 %v668
    %v670 = vpop.xlane.xlu0 %669
    %v671 = vsel %vm193, %v661, 0.0
    %672 = vadd.xlane.f32.xlu0 %v671
    %v673 = vpop.xlane.xlu0 %672
    %v674 = vsel %vm193, %v662, 0.0
    %675 = vadd.xlane.f32.xlu0 %v674
    %v676 = vpop.xlane.xlu0 %675
    %v677 = vmul.f32 %v667, %v395
    %v678 = vmul.f32 %v670, %v395
    %v679 = vmul.f32 %v673, %v395
    %v680 = vmul.f32 %v676, %v395
    %v681 = vsub.f32 %v659, %v677
    %v682 = vsub.f32 %v660, %v678
    %v683 = vsub.f32 %v661, %v679
    %v684 = vsub.f32 %v662, %v680
    %v685 = vmul.f32 %v681, %v681
    %v686 = vmul.f32 %v682, %v682
    %v687 = vmul.f32 %v683, %v683
    %v688 = vmul.f32 %v684, %v684
    %v689 = vsel %vm193, %v685, 0.0
    %690 = vadd.xlane.f32.xlu0 %v689
    %v691 = vpop.xlane.xlu0 %690
    %v692 = vsel %vm193, %v686, 0.0
    %693 = vadd.xlane.f32.xlu0 %v692
    %v694 = vpop.xlane.xlu0 %693
    %v695 = vsel %vm193, %v687, 0.0
    %696 = vadd.xlane.f32.xlu0 %v695
    %v697 = vpop.xlane.xlu0 %696
    %v698 = vsel %vm193, %v688, 0.0
    %699 = vadd.xlane.f32.xlu0 %v698
    %v700 = vpop.xlane.xlu0 %699
    %v701 = vmul.f32 %v691, %v395
    %v702 = vmul.f32 %v694, %v395
    %v703 = vmul.f32 %v697, %v395
    %v704 = vmul.f32 %v700, %v395
    %v705 = vadd.f32 %v701, 1e-05
    %v706 = vadd.f32 %v702, 1e-05
    %v707 = vadd.f32 %v703, 1e-05
    %v708 = vadd.f32 %v704, 1e-05
    %v709 = vrsqrt.pop %v705
    %v710 = vmul.f32 %v709, %v705
    %v711 = vmul.f32 %v710, %v709
    %v712 = vmul.f32 0.5, %v711
    %v713 = vsub.f32 1.5, %v712
    %v714 = vmul.f32 %v709, %v713
    %vm715 = vweird.f32 %v705
    %vm716 = vweird.f32 %v709
    %vm717 = vmor %vm715, %vm716
    %v718 = vsel %vm717, %v709, %v714
    %v719 = vrsqrt.pop %v706
    %v720 = vmul.f32 %v719, %v706
    %v721 = vmul.f32 %v720, %v719
    %v722 = vmul.f32 0.5, %v721
    %v723 = vsub.f32 1.5, %v722
    %v724 = vmul.f32 %v719, %v723
    %vm725 = vweird.f32 %v706
    %vm726 = vweird.f32 %v719
    %vm727 = vmor %vm725, %vm726
    %v728 = vsel %vm727, %v719, %v724
    %v729 = vrsqrt.pop %v707
    %v730 = vmul.f32 %v729, %v707
    %v731 = vmul.f32 %v730, %v729
    %v732 = vmul.f32 0.5, %v731
    %v733 = vsub.f32 1.5, %v732
    %v734 = vmul.f32 %v729, %v733
    %vm735 = vweird.f32 %v707
    %vm736 = vweird.f32 %v729
    %vm737 = vmor %vm735, %vm736
    %v738 = vsel %vm737, %v729, %v734
    %v739 = vrsqrt.pop %v708
    %v740 = vmul.f32 %v739, %v708
    %v741 = vmul.f32 %v740, %v739
    %v742 = vmul.f32 0.5, %v741
    %v743 = vsub.f32 1.5, %v742
    %v744 = vmul.f32 %v739, %v743
    %vm745 = vweird.f32 %v708
    %vm746 = vweird.f32 %v739
    %vm747 = vmor %vm745, %vm746
    %v748 = vsel %vm747, %v739, %v744
    %v749 = vmul.f32 %v681, %v718
    %v750 = vmul.f32 %v682, %v728
    %v751 = vmul.f32 %v683, %v738
    %v752 = vmul.f32 %v684, %v748
    %v754 = vperm.slane %v663, 0
    %v756 = vmul.f32 %v749, %v754
    %v757 = vmul.f32 %v750, %v754
    %v758 = vmul.f32 %v751, %v754
    %v759 = vmul.f32 %v752, %v754
    %v761 = vperm.slane %v664, 0
    %v763 = vadd.f32 %v756, %v761
    %v764 = vadd.f32 %v757, %v761
    %v765 = vadd.f32 %v758, %v761
    %v766 = vadd.f32 %v759, %v761
    %v767 = vld [vmem:[%s10] sm:$0x1]
    %v769 = vperm.slane %v767, 0
    %v771 = vmul.f32 %v763, %v769
    %v772 = vmul.f32 %v764, %v769
    %v773 = vmul.f32 %v765, %v769
    %v774 = vmul.f32 %v766, %v769
    %v775 = vsel %vm193, %v771, 0.0
    %776 = vadd.xlane.f32.xlu0 %v775
    %v777 = vpop.xlane.xlu0 %776
    %v778 = vsel %vm193, %v772, 0.0
    %779 = vadd.xlane.f32.xlu0 %v778
    %v780 = vpop.xlane.xlu0 %779
    %v781 = vsel %vm193, %v773, 0.0
    %782 = vadd.xlane.f32.xlu0 %v781
    %v783 = vpop.xlane.xlu0 %782
    %v784 = vsel %vm193, %v774, 0.0
    %785 = vadd.xlane.f32.xlu0 %v784
    %v786 = vpop.xlane.xlu0 %785
    %s787 = sld [smem:[#allocation2]]
    %v788 = vstv %s787
    %v789 = vadd.f32 %v777, %v788
    %v790 = vadd.f32 %v780, %v788
    %v791 = vadd.f32 %v783, %v788
    %v792 = vadd.f32 %v786, %v788
    %v793 = vld [vmem:[%s1] sm:$0x1]
    %vm794 = vcmp.ne.s32.totalorder %v793, 0
    %v799 = vperm.slane %v789, 0
    %v800 = vperm.slane %v789, 1
    %v801 = vperm.slane %v789, 2
    %v802 = vperm.slane %v789, 3
    %v803 = vperm.slane %v789, 4
    %v804 = vperm.slane %v789, 5
    %v805 = vperm.slane %v789, 6
    %v806 = vperm.slane %v789, 7
    %v807 = vperm.slane %v790, 0
    %v808 = vperm.slane %v790, 1
    %v809 = vperm.slane %v790, 2
    %v810 = vperm.slane %v790, 3
    %v811 = vperm.slane %v790, 4
    %v812 = vperm.slane %v790, 5
    %v813 = vperm.slane %v790, 6
    %v814 = vperm.slane %v790, 7
    %v815 = vperm.slane %v791, 0
    %v816 = vperm.slane %v791, 1
    %v817 = vperm.slane %v791, 2
    %v818 = vperm.slane %v791, 3
    %v819 = vperm.slane %v791, 4
    %v820 = vperm.slane %v791, 5
    %v821 = vperm.slane %v791, 6
    %v822 = vperm.slane %v791, 7
    %v823 = vperm.slane %v792, 0
    %v824 = vperm.slane %v792, 1
    %v825 = vperm.slane %v792, 2
    %v826 = vperm.slane %v792, 3
    %v827 = vperm.slane %v792, 4
    %v828 = vperm.slane %v792, 5
    %v829 = vperm.slane %v792, 6
    %v830 = vperm.slane %v792, 7
    %831 = vst [vmem:[#allocation1] ss:$9 sm:$0xff] %v799
    %s832 = scalar_lea.vmem [#allocation1], 1
    %833 = vst [vmem:[%s832] ss:$9 sm:$0xff] %v800
    %s834 = scalar_lea.vmem [#allocation1], 2
    %835 = vst [vmem:[%s834] ss:$9 sm:$0xff] %v801
    %s836 = scalar_lea.vmem [#allocation1], 3
    %837 = vst [vmem:[%s836] ss:$9 sm:$0xff] %v802
    %s838 = scalar_lea.vmem [#allocation1], 4
    %839 = vst [vmem:[%s838] ss:$9 sm:$0xff] %v803
    %s840 = scalar_lea.vmem [#allocation1], 5
    %841 = vst [vmem:[%s840] ss:$9 sm:$0xff] %v804
    %s842 = scalar_lea.vmem [#allocation1], 6
    %843 = vst [vmem:[%s842] ss:$9 sm:$0xff] %v805
    %s844 = scalar_lea.vmem [#allocation1], 7
    %845 = vst [vmem:[%s844] ss:$9 sm:$0xff] %v806
    %v846 = vld [vmem:[#allocation1] sm:$0xff]
    %847 = vst [vmem:[#allocation1] ss:$9 sm:$0xff] %v807
    %848 = vst [vmem:[%s832] ss:$9 sm:$0xff] %v808
    %849 = vst [vmem:[%s834] ss:$9 sm:$0xff] %v809
    %850 = vst [vmem:[%s836] ss:$9 sm:$0xff] %v810
    %851 = vst [vmem:[%s838] ss:$9 sm:$0xff] %v811
    %852 = vst [vmem:[%s840] ss:$9 sm:$0xff] %v812
    %853 = vst [vmem:[%s842] ss:$9 sm:$0xff] %v813
    %854 = vst [vmem:[%s844] ss:$9 sm:$0xff] %v814
    %v855 = vld [vmem:[#allocation1] sm:$0xff]
    %856 = vst [vmem:[#allocation1] ss:$9 sm:$0xff] %v815
    %857 = vst [vmem:[%s832] ss:$9 sm:$0xff] %v816
    %858 = vst [vmem:[%s834] ss:$9 sm:$0xff] %v817
    %859 = vst [vmem:[%s836] ss:$9 sm:$0xff] %v818
    %860 = vst [vmem:[%s838] ss:$9 sm:$0xff] %v819
    %861 = vst [vmem:[%s840] ss:$9 sm:$0xff] %v820
    %862 = vst [vmem:[%s842] ss:$9 sm:$0xff] %v821
    %863 = vst [vmem:[%s844] ss:$9 sm:$0xff] %v822
    %v864 = vld [vmem:[#allocation1] sm:$0xff]
    %865 = vst [vmem:[#allocation1] ss:$9 sm:$0xff] %v823
    %866 = vst [vmem:[%s832] ss:$9 sm:$0xff] %v824
    %867 = vst [vmem:[%s834] ss:$9 sm:$0xff] %v825
    %868 = vst [vmem:[%s836] ss:$9 sm:$0xff] %v826
    %869 = vst [vmem:[%s838] ss:$9 sm:$0xff] %v827
    %870 = vst [vmem:[%s840] ss:$9 sm:$0xff] %v828
    %871 = vst [vmem:[%s842] ss:$9 sm:$0xff] %v829
    %872 = vst [vmem:[%s844] ss:$9 sm:$0xff] %v830
    %v873 = vld [vmem:[#allocation1] sm:$0xff]
    %874 = vset.pattern.permute.xlu0 0
    %875 = vperm.xlu0 %874, %v846
    %v876 = vpop.permute.xlu0 %875
    %877 = vset.pattern.permute.xlu0 0
    %878 = vperm.xlu0 %877, %v855
    %v879 = vpop.permute.xlu0 %878
    %880 = vset.pattern.permute.xlu0 0
    %881 = vperm.xlu0 %880, %v864
    %v882 = vpop.permute.xlu0 %881
    %883 = vset.pattern.permute.xlu0 0
    %884 = vperm.xlu0 %883, %v873
    %v885 = vpop.permute.xlu0 %884
    %v886 = vlaneseq
    %v887 = vand.u32 %v886, 127
    %v888 = vperm.slane %v876, %v887
    %v889 = vadd.s32 %v887, 4294967288
    %v890 = vperm.slane %v879, %v889
    %vm891 = vcmask 130112
    %v892 = vsel %vm891, %v890, %v888
    %v893 = vadd.s32 %v887, 4294967280
    %v894 = vperm.slane %v882, %v893
    %vm895 = vcmask 195712
    %v896 = vsel %vm895, %v894, %v892
    %v897 = vadd.s32 %v887, 4294967272
    %v898 = vperm.slane %v885, %v897
    %vm899 = vcmask 261312
    %v900 = vsel %vm899, %v898, %v896
    %v902 = vsel %vm794, 0.0, %v900
    %vm903 = vcmask 253952
    %904 = vst.msk [vmem:[#allocation9] sm:$0x1] %vm903, %v902
    // Predicated region
    $region62: #{tpu_custom_call.1} parent=1 // pred_check
      _
    $region63: #{tpu_custom_call.1} parent=1 // pred_check_branch
      %906 = sbr.rel (0) target = $region65
    $region64: #{tpu_custom_call.1} parent=1 // pred_region
      %908 = vsyncadd [#allocation5], 0
      %s910 = sshll.u32 [#allocation9], 4
      %s911 = int_to_ptr.vmem [resolvable:$true] %s910
      %s912 = sshll.u32 %s12, 4
      %s913 = int_to_ptr.hbm [resolvable:$true] %s912
      %915 = dma.vmem_to_hbm [thread:$0]  %s911, 16, %s913, [#allocation5]
    $region65: #{tpu_custom_call.1} parent=1 // pred_fallthru
      _
    // Predicated region
    $region66: #{tpu_custom_call.1} parent=1 // pred_check
      _
    $region67: #{tpu_custom_call.1} parent=1 // pred_check_branch
      %917 = sbr.rel (0) target = $region69
    $region68: #{tpu_custom_call.1} parent=1 // pred_region
      %919 = dma.done [#allocation5], 16
    $region69: #{tpu_custom_call.1} parent=1 // pred_fallthru
      _
    %920 = vsyncpa [#allocation4], 1
    %921 = vsyncpa [#allocation7], 1
    %922 = vsyncpa [#allocation5], 1

</llo_original>
